<compile_context>
chip_gen: v6e
topology: v6e:2x2x1
jax: 0.10.0
libtpu: 0.0.40
codegen_flags: <defaults>
</compile_context>

<pallas_src>
import numpy as np
import jax
import jax.numpy as jnp
from jax.experimental import pallas as pl
from jax.experimental.pallas import tpu as pltpu


def _linear_kernel(x_ref, w_ref, b_ref, o_ref):
    # x_ref: (tm, K), w_ref: (K, N), b_ref: (1, N), o_ref: (tm, N)
    acc = jnp.dot(x_ref[...], w_ref[...], preferred_element_type=jnp.float32)
    o_ref[...] = (acc + b_ref[...]).astype(o_ref.dtype)


def mylayer_pallas(x, weight, bias=None, *, block_m=128):
    """u = x @ W + bias.

    x:      (M, K) float32
    weight: (K, N) or (1, 1, K, N) (as stored by the torch module)
    bias:   (N,) float32 or None
    """
    if weight.ndim == 4:
        weight = weight.reshape(weight.shape[-2], weight.shape[-1])
    M, K = x.shape
    Kw, N = weight.shape
    assert K == Kw, "inner dims must match"

    if bias is None:
        bias2d = jnp.zeros((1, N), dtype=jnp.float32)
    else:
        bias2d = jnp.asarray(bias, dtype=jnp.float32).reshape(1, N)

    x = x.astype(jnp.float32)
    weight = weight.astype(jnp.float32)

    # Pick an M tile: full M if small, otherwise block_m; keep >= 2 grid steps
    # when possible so both v7x TensorCores are used.
    if M <= block_m:
        tm = M if M % (2 * 8) != 0 else M // 2
        if tm == 0 or M % tm != 0:
            tm = M
    else:
        tm = block_m
    assert M % tm == 0, "M must be divisible by the chosen tile"
    assert tm == M or tm % 8 == 0, "M tile must be a multiple of 8 (sublane)"
    grid = (M // tm,)

    return pl.pallas_call(
        _linear_kernel,
        out_shape=jax.ShapeDtypeStruct((M, N), jnp.float32),
        grid_spec=pltpu.PrefetchScalarGridSpec(
            num_scalar_prefetch=0,
            grid=grid,
            in_specs=[
                pl.BlockSpec((tm, K), lambda i: (i, 0)),   # x row tile
                pl.BlockSpec((K, N), lambda i: (0, 0)),    # full weight (resident)
                pl.BlockSpec((1, N), lambda i: (0, 0)),    # bias (resident)
            ],
            out_specs=pl.BlockSpec((tm, N), lambda i: (i, 0)),
        ),
        compiler_params=pltpu.CompilerParams(
            dimension_semantics=("parallel",)),
    )(x, weight, bias2d)


if __name__ == "__main__":
    key = jax.random.PRNGKey(0)
    kx, kw = jax.random.split(key)

    # Shapes implied by forward: x (M, input_size), weight (1,1,input_size,output_size)
    M, input_size, output_size = 128, 64, 128

    x = jax.random.normal(kx, (M, input_size), dtype=jnp.float32)

    # reset_parameters(): xavier_uniform_ on the 4D weight, bias constant 0.1
    limit = float(np.sqrt(6.0 / (input_size + output_size)))
    weight = jax.random.uniform(kw, (1, 1, input_size, output_size),
                                dtype=jnp.float32, minval=-limit, maxval=limit)
    bias = jnp.full((output_size,), 0.1, dtype=jnp.float32)

    out = mylayer_pallas(x, weight, bias)
    out = jax.block_until_ready(out)

    # Reference (matches torch: u = x @ W + bias; no activation in forward)
    ref = x @ weight.reshape(input_size, output_size) + bias[None, :]
    assert np.allclose(np.asarray(out), np.asarray(ref), atol=1e-4, rtol=1e-4)

    print("KERNEL_OK")
</pallas_src>

<mosaic_0001>
module attributes {stable_mosaic.version = 11 : i64} {
  func.func @_linear_kernel(%arg0: i32, %arg1: memref<64x64xf32, #tpu.memory_space<vmem>>, %arg2: memref<64x128xf32, #tpu.memory_space<vmem>>, %arg3: memref<1x128xf32, #tpu.memory_space<vmem>>, %arg4: memref<64x128xf32, #tpu.memory_space<vmem>>) attributes {dimension_semantics = [#tpu.dimension_semantics<parallel>], iteration_bounds = array<i64: 2>, scalar_prefetch = 0 : i64, scratch_operands = 0 : i64, tpu.core_type = #tpu.core_type<tc>, window_params = [{transform_indices = @transform_0, window_bounds = array<i64: 64, 64>}, {pipeline_mode = #tpu.pipeline_mode<synchronous>, transform_indices = @transform_1, window_bounds = array<i64: 64, 128>}, {pipeline_mode = #tpu.pipeline_mode<synchronous>, transform_indices = @transform_2, window_bounds = array<i64: 1, 128>}, {transform_indices = @transform_3, window_bounds = array<i64: 64, 128>}]} {
    %c0 = arith.constant 0 : index
    %c0_0 = arith.constant 0 : index
    %0 = vector.load %arg1[%c0, %c0_0] : memref<64x64xf32, #tpu.memory_space<vmem>>, vector<64x64xf32>
    %c0_1 = arith.constant 0 : index
    %c0_2 = arith.constant 0 : index
    %1 = vector.load %arg2[%c0_1, %c0_2] : memref<64x128xf32, #tpu.memory_space<vmem>>, vector<64x128xf32>
    %cst = arith.constant dense<0.000000e+00> : vector<64x128xf32>
    %2 = tpu.matmul %0, %1, %cst {dimension_numbers = #tpu.dot_dimension_numbers<[1], [0], [0], [1], [0, 0, 1, 1], [], []>} : vector<64x64xf32>, vector<64x128xf32>, vector<64x128xf32> -> vector<64x128xf32>
    %c0_3 = arith.constant 0 : index
    %c0_4 = arith.constant 0 : index
    %3 = vector.load %arg3[%c0_3, %c0_4] : memref<1x128xf32, #tpu.memory_space<vmem>>, vector<1x128xf32>
    %4 = vector.broadcast %3 : vector<1x128xf32> to vector<64x128xf32>
    %5 = arith.addf %2, %4 : vector<64x128xf32>
    %c0_5 = arith.constant 0 : index
    %c0_6 = arith.constant 0 : index
    %6 = vector.load %arg4[%c0_5, %c0_6] : memref<64x128xf32, #tpu.memory_space<vmem>>, vector<64x128xf32>
    tpu.vector_store %arg4[%c0_5, %c0_6], %5 {strides = array<i32>} : memref<64x128xf32, #tpu.memory_space<vmem>>, vector<64x128xf32>,
    return
  }
  func.func @transform_0(%arg0: i32) -> (i32, i32) {
    %c0_i32 = arith.constant 0 : i32
    %c0_i32_0 = arith.constant 0 : i32
    return %arg0, %c0_i32 : i32, i32
  }
  func.func @transform_1(%arg0: i32) -> (i32, i32) {
    %c0_i32 = arith.constant 0 : i32
    %c0_i32_0 = arith.constant 0 : i32
    %c0_i32_1 = arith.constant 0 : i32
    return %c0_i32, %c0_i32_0 : i32, i32
  }
  func.func @transform_2(%arg0: i32) -> (i32, i32) {
    %c0_i32 = arith.constant 0 : i32
    %c0_i32_0 = arith.constant 0 : i32
    %c0_i32_1 = arith.constant 0 : i32
    return %c0_i32, %c0_i32_0 : i32, i32
  }
  func.func @transform_3(%arg0: i32) -> (i32, i32) {
    %c0_i32 = arith.constant 0 : i32
    %c0_i32_0 = arith.constant 0 : i32
    return %arg0, %c0_i32 : i32, i32
  }
}

</mosaic_0001>

<llo_original>
// kernel: tpu_custom_call.1
$region0: #{tpu_custom_call.1}
  #allocation0 [shape = 'u32[]', space=smem, size = 0x4, offset = 0x4, fixed_abs, tag = 'smem constant byte address 0x4 - core index']
  #allocation1 [shape = 'u32[144,128]{1,0:T(1,128)}', space=vmem, size = 0x12000, scoped, tag = 'internal scratch']
  %s0 = inlined_call_operand.vmem [shape: f32[128,64], index: 0, kind: input, shape index: {}]
  %s1 = inlined_call_operand.vmem [shape: f32[64,128], index: 1, kind: input, shape index: {}]
  %s2 = inlined_call_operand.vmem [shape: f32[1,128], index: 2, kind: input, shape index: {}]
  %s3 = inlined_call_operand.hbm [shape: f32[128,128], index: 3, kind: output, shape index: {}]
  %s4 = sld [smem:[#allocation0]]
  $region45: #{tpu_custom_call.1} parent=0
    _
  %s6 = ssub.s32 1, %s4
  %s7 = scalar_select 0, %s6, %s4
  $region1: #{tpu_custom_call.1} parent=0
    #allocation2 [shape = 'u8[65536]{0}', space=vmem, size = 0x10000, scoped, tag = 'output window, operand 0']
    #allocation3 [shape = 's32[2]{0}', space=sflag, size = 0x8, scoped, tag = 'scoped memory for tpu_custom_call.1']
    %8 = vsyncpa [#allocation3], 0
    %s9 = scalar_lea.sflag [#allocation3], 1
    %10 = vsyncpa %s9, 0
    loop: start=0, step=1, limit=4
    $region2: #{tpu_custom_call.1} parent=1 // loop_pre_header
      _
    $region3: #{tpu_custom_call.1} parent=1 // loop_header
      %s12 = sphi 0, %s16
      %p13 = scmp.ge.s32.totalorder %s12, 4
      %s22 = sphi 0, %s24
      %s25 = sphi 0, %s22
      %s26 = sphi 0, %s25
      %s42 = sphi 0, %s26
      %s46 = sphi 0, %s46
      %s48 = sphi 0, %s46
      %s49 = sphi 0, %s48
      %s63 = sphi 0, %s49
      %s67 = sphi 0, %s67
      %s69 = sphi 0, %s67
      %s70 = sphi 0, %s69
      %s84 = sphi 0, %s70
      %s90 = sphi 0, %s92
      %s93 = sphi 0, %s90
      %s94 = sphi 0, %s93
      %s110 = sphi 0, %s94
    $region4: #{tpu_custom_call.1} parent=1 // loop_header_branch
      %15 = sbr.rel (%p13) target = $region8
    $region5: #{tpu_custom_call.1} parent=1 // loop_body
      %s17 = ssub.s32 %s12, 1
      %s18 = ssub.s32 %s12, 2
      %s19 = sadd.s32 %s12, 1
      %s20 = ssub.s32 %s12, %s19
      %p21 = scmp.eq.s32.totalorder %s20, 0
      %s23 = sadd.s32 %s22, 1
      %s24 = scalar_select %p21, %s22, %s23
      %p27 = pneg %p21
      %p28 = scmp.eq.s32.totalorder %s12, 1
      %p29 = por %p27, %p28
      %p30 = scmp.ne.s32.totalorder %s22, %s25
      %p31 = scmp.eq.s32.totalorder %s12, 0
      %p32 = por %p30, %p31
      %p33 = scmp.ne.s32.totalorder %s22, %s25
      %p34 = scmp.eq.s32.totalorder %s17, 1
      %p35 = por %p33, %p34
      %p36 = scmp.ne.s32.totalorder %s25, %s26
      %p37 = scmp.eq.s32.totalorder %s17, 0
      %p38 = por %p36, %p37
      %p39 = scmp.ne.s32.totalorder %s25, %s26
      %p40 = scmp.eq.s32.totalorder %s18, 1
      %p41 = por %p39, %p40
      %p43 = scmp.ne.s32.totalorder %s26, %s42
      %p44 = scmp.eq.s32.totalorder %s18, 0
      %p45 = por %p43, %p44
      %s47 = sadd.s32 %s46, 1
      %p50 = scmp.eq.s32.totalorder %s12, 1
      %p51 = scmp.ne.s32.totalorder %s46, %s48
      %p52 = scmp.eq.s32.totalorder %s12, 0
      %p53 = por %p51, %p52
      %p54 = scmp.ne.s32.totalorder %s46, %s48
      %p55 = scmp.eq.s32.totalorder %s17, 1
      %p56 = por %p54, %p55
      %p57 = scmp.ne.s32.totalorder %s48, %s49
      %p58 = scmp.eq.s32.totalorder %s17, 0
      %p59 = por %p57, %p58
      %p60 = scmp.ne.s32.totalorder %s48, %s49
      %p61 = scmp.eq.s32.totalorder %s18, 1
      %p62 = por %p60, %p61
      %p64 = scmp.ne.s32.totalorder %s49, %s63
      %p65 = scmp.eq.s32.totalorder %s18, 0
      %p66 = por %p64, %p65
      %s68 = sadd.s32 %s67, 1
      %p71 = scmp.eq.s32.totalorder %s12, 1
      %p72 = scmp.ne.s32.totalorder %s67, %s69
      %p73 = scmp.eq.s32.totalorder %s12, 0
      %p74 = por %p72, %p73
      %p75 = scmp.ne.s32.totalorder %s67, %s69
      %p76 = scmp.eq.s32.totalorder %s17, 1
      %p77 = por %p75, %p76
      %p78 = scmp.ne.s32.totalorder %s69, %s70
      %p79 = scmp.eq.s32.totalorder %s17, 0
      %p80 = por %p78, %p79
      %p81 = scmp.ne.s32.totalorder %s69, %s70
      %p82 = scmp.eq.s32.totalorder %s18, 1
      %p83 = por %p81, %p82
      %p85 = scmp.ne.s32.totalorder %s70, %s84
      %p86 = scmp.eq.s32.totalorder %s18, 0
      %p87 = por %p85, %p86
      %s88 = ssub.s32 %s12, %s19
      %p89 = scmp.eq.s32.totalorder %s88, 0
      %s91 = sadd.s32 %s90, 1
      %s92 = scalar_select %p89, %s90, %s91
      %p95 = pneg %p89
      %p96 = scmp.eq.s32.totalorder %s12, 1
      %p97 = por %p95, %p96
      %p98 = scmp.ne.s32.totalorder %s90, %s93
      %p99 = scmp.eq.s32.totalorder %s12, 0
      %p100 = por %p98, %p99
      %p101 = scmp.ne.s32.totalorder %s90, %s93
      %p102 = scmp.eq.s32.totalorder %s17, 1
      %p103 = por %p101, %p102
      %p104 = scmp.ne.s32.totalorder %s93, %s94
      %p105 = scmp.eq.s32.totalorder %s17, 0
      %p106 = por %p104, %p105
      %p107 = scmp.ne.s32.totalorder %s93, %s94
      %p108 = scmp.eq.s32.totalorder %s18, 1
      %p109 = por %p107, %p108
      %p111 = scmp.ne.s32.totalorder %s94, %s110
      %p112 = scmp.eq.s32.totalorder %s18, 0
      %p113 = por %p111, %p112
      %p114 = scmp.le.s32.totalorder 1, %s12
      %p115 = scmp.lt.s32.totalorder %s12, 3
      %p116 = pnand %p114, %p115
      %p117 = pneg %p116
      // Predicated region
      $region9: #{tpu_custom_call.1} parent=5 // pred_check
        _
      $region10: #{tpu_custom_call.1} parent=5 // pred_check_branch
        %119 = sbr.rel (%p116) target = $region12
      $region11: #{tpu_custom_call.1} parent=5 // pred_region
        %s120 = ssub.s32 %s12, 1
        // Predicated region
        $region13: #{tpu_custom_call.1} parent=11 // pred_check
          %p121 = pneg %p59
        $region14: #{tpu_custom_call.1} parent=11 // pred_check_branch
          %123 = sbr.rel (%p121) target = $region16
        $region15: #{tpu_custom_call.1} parent=11 // pred_region
          _
        $region16: #{tpu_custom_call.1} parent=11 // pred_fallthru
          _
        // Predicated region
        $region17: #{tpu_custom_call.1} parent=11 // pred_check
          %p124 = pneg %p80
        $region18: #{tpu_custom_call.1} parent=11 // pred_check_branch
          %126 = sbr.rel (%p124) target = $region20
        $region19: #{tpu_custom_call.1} parent=11 // pred_region
          _
        $region20: #{tpu_custom_call.1} parent=11 // pred_fallthru
          _
      $region12: #{tpu_custom_call.1} parent=5 // pred_fallthru
        _
      %p127 = scmp.lt.s32.totalorder %s12, 2
      // Predicated region
      $region21: #{tpu_custom_call.1} parent=5 // pred_check
        %p128 = pneg %p127
      $region22: #{tpu_custom_call.1} parent=5 // pred_check_branch
        %130 = sbr.rel (%p128) target = $region24
      $region23: #{tpu_custom_call.1} parent=5 // pred_region
        // Predicated region
        $region25: #{tpu_custom_call.1} parent=23 // pred_check
          %p131 = pneg %p32
        $region26: #{tpu_custom_call.1} parent=23 // pred_check_branch
          %133 = sbr.rel (%p131) target = $region28
        $region27: #{tpu_custom_call.1} parent=23 // pred_region
          %s134 = smul.u32 8, %s12
          %p135 = scmp.lt.s32.totalorder %s134, 15
          %s136 = scalar_select %p135, %s134, 15
          %s137 = smul.addr %s136, 8
          %s138 = scalar_lea.vmem %s0, %s137
          %s139 = smul.u32 8, %s12
        $region28: #{tpu_custom_call.1} parent=23 // pred_fallthru
          _
      $region24: #{tpu_custom_call.1} parent=5 // pred_fallthru
        _
      %p140 = scmp.le.s32.totalorder 1, %s12
      %p141 = scmp.lt.s32.totalorder %s12, 3
      %p142 = pnand %p140, %p141
      %p143 = pneg %p142
      // Predicated region
      $region29: #{tpu_custom_call.1} parent=5 // pred_check
        _
      $region30: #{tpu_custom_call.1} parent=5 // pred_check_branch
        %145 = sbr.rel (%p142) target = $region32
      $region31: #{tpu_custom_call.1} parent=5 // pred_region
        %s146 = ssub.s32 %s12, 1
        %s147 = smul.u32 8, %s17
        %p148 = scmp.lt.s32.totalorder %s147, 15
        %s149 = scalar_select %p148, %s147, 15
        %s150 = smul.addr %s149, 8
        %s151 = scalar_lea.vmem %s0, %s150
        %p152 = pneg %p38
        %p153 = pneg %p35
        %p154 = pneg %p59
        %p155 = pneg %p56
        %p156 = pneg %p80
        %p157 = pneg %p77
        %p158 = pneg %p106
        %p159 = pneg %p103
        %s160 = sand.u32 %s93, 1
        %s161 = scalar_lea.sflag [#allocation3], %s160
        %s162 = sand.u32 %s93, 1
        %s163 = smul.addr %s162, 64
        %s164 = scalar_lea.vmem [#allocation2], %s163
        %s165 = smul.u32 8, %s17
        %p166 = scmp.lt.s32.totalorder %s165, 15
        %s167 = scalar_select %p166, %s165, 15
        %s168 = smul.addr %s167, 8
        %s169 = scalar_lea.vmem %s0, %s168
        %s170 = smul.u32 8, %s17
        %s171 = smul.u32 8, %s17
        %v172 = vld [vmem:[%s169] sm:$0xff]
        %v173 = vld [vmem:[%s169 + $0x8] sm:$0xff]
        %v174 = vld [vmem:[%s169 + $0x10] sm:$0xff]
        %v175 = vld [vmem:[%s169 + $0x18] sm:$0xff]
        %v176 = vld [vmem:[%s169 + $0x20] sm:$0xff]
        %v177 = vld [vmem:[%s169 + $0x28] sm:$0xff]
        %v178 = vld [vmem:[%s169 + $0x30] sm:$0xff]
        %v179 = vld [vmem:[%s169 + $0x38] sm:$0xff]
        %v180 = vld [vmem:[%s1] sm:$0xff]
        %v181 = vld [vmem:[%s1 + $0x8] sm:$0xff]
        %v182 = vld [vmem:[%s1 + $0x10] sm:$0xff]
        %v183 = vld [vmem:[%s1 + $0x18] sm:$0xff]
        %v184 = vld [vmem:[%s1 + $0x20] sm:$0xff]
        %v185 = vld [vmem:[%s1 + $0x28] sm:$0xff]
        %v186 = vld [vmem:[%s1 + $0x30] sm:$0xff]
        %v187 = vld [vmem:[%s1 + $0x38] sm:$0xff]
        %v188 = vld [vmem:[%s2] sm:$0x1]
        %v190 = vlaneseq
        %v191 = vshrl.u32 %v190, 7
        %v192 = vsub.s32 0, %v191
        %v193 = vrot.slane %v188, %v192
        %vm195 = vcmask 523264
        %v197 = vsel %vm195, %v172, 0
        %v200 = vsel %vm195, %v173, 0
        %v203 = vsel %vm195, %v174, 0
        %v206 = vsel %vm195, %v175, 0
        %v209 = vsel %vm195, %v176, 0
        %v212 = vsel %vm195, %v177, 0
        %v215 = vsel %vm195, %v178, 0
        %v218 = vsel %vm195, %v179, 0
        %220 = vmatprep.subr.mxu0 0.0
        %221 = vmatpush1.msra.mxu0 0.0
        %222 = vmatprep.subr.mxu0 0.0
        %223 = vmatpush1.msra.mxu0 0.0
        %224 = vmatprep.subr.mxu0 0.0
        %225 = vmatpush1.msra.mxu0 0.0
        %226 = vmatprep.subr.mxu0 0.0
        %227 = vmatpush1.msra.mxu0 0.0
        %228 = vmatprep.subr.mxu0 0.0
        %229 = vmatpush1.msra.mxu0 0.0
        %230 = vmatprep.subr.mxu0 0.0
        %231 = vmatpush1.msra.mxu0 0.0
        %232 = vmatprep.subr.mxu0 0.0
        %233 = vmatpush1.msra.mxu0 0.0
        %234 = vmatprep.subr.mxu0 0.0
        %235 = vmatpush1.msra.mxu0 0.0
        %236 = vmatprep.subr.mxu0 0.0
        %237 = vmatpush1.msra.mxu0 %v187
        %238 = vmatprep.subr.mxu0 0.0
        %239 = vmatpush1.msra.mxu0 %v186
        %240 = vmatprep.subr.mxu0 0.0
        %241 = vmatpush1.msra.mxu0 %v185
        %242 = vmatprep.subr.mxu0 0.0
        %243 = vmatpush1.msra.mxu0 %v184
        %244 = vmatprep.subr.mxu0 0.0
        %245 = vmatpush1.msra.mxu0 %v183
        %246 = vmatprep.subr.mxu0 0.0
        %247 = vmatpush1.msra.mxu0 %v182
        %248 = vmatprep.subr.mxu0 0.0
        %249 = vmatpush1.msra.mxu0 %v181
        %250 = vmatprep.subr.mxu0 0.0
        %251 = vmatpush1.msra.mxu0 %v180
        %252 = vmatprep.subr.mxu0 0.0
        %253 = vmatpush2.msra.mxu0 0.0
        %254 = vmatprep.subr.mxu0 0.0
        %255 = vmatpush2.msra.mxu0 0.0
        %256 = vmatprep.subr.mxu0 0.0
        %257 = vmatpush2.msra.mxu0 0.0
        %258 = vmatprep.subr.mxu0 0.0
        %259 = vmatpush2.msra.mxu0 0.0
        %260 = vmatprep.subr.mxu0 0.0
        %261 = vmatpush2.msra.mxu0 0.0
        %262 = vmatprep.subr.mxu0 0.0
        %263 = vmatpush2.msra.mxu0 0.0
        %264 = vmatprep.subr.mxu0 0.0
        %265 = vmatpush2.msra.mxu0 0.0
        %266 = vmatprep.subr.mxu0 0.0
        %267 = vmatpush2.msra.mxu0 0.0
        %268 = vmatprep.subr.mxu0 0.0
        %269 = vmatpush2.msra.mxu0 0.0
        %270 = vmatprep.subr.mxu0 0.0
        %271 = vmatpush2.msra.mxu0 0.0
        %272 = vmatprep.subr.mxu0 0.0
        %273 = vmatpush2.msra.mxu0 0.0
        %274 = vmatprep.subr.mxu0 0.0
        %275 = vmatpush2.msra.mxu0 0.0
        %276 = vmatprep.subr.mxu0 0.0
        %277 = vmatpush2.msra.mxu0 0.0
        %278 = vmatprep.subr.mxu0 0.0
        %279 = vmatpush2.msra.mxu0 0.0
        %280 = vmatprep.subr.mxu0 0.0
        %281 = vmatpush2.msra.mxu0 0.0
        %282 = vmatprep.subr.mxu0 0.0
        %283 = vmatpush2.msra.mxu0 0.0
        %284 = vmatprep.mubr.f32.mxu0 0.0
        %285 = vmatmul.mubr.f32.gmra.mxu0 %v197
        %v286 = vpop.f32.mrf.mxu0
        %v287 = vadd.f32 %v193, %v286
        %v288 = vpop.f32.mrf.mxu0
        %289 = vmatprep.mubr.f32.mxu0 0.0
        %290 = vmatmul.mubr.f32.gmra.mxu0 %v200
        %v291 = vpop.f32.mrf.mxu0
        %v292 = vadd.f32 %v193, %v291
        %v293 = vpop.f32.mrf.mxu0
        %294 = vmatprep.mubr.f32.mxu0 0.0
        %295 = vmatmul.mubr.f32.gmra.mxu0 %v203
        %v296 = vpop.f32.mrf.mxu0
        %v297 = vadd.f32 %v193, %v296
        %v298 = vpop.f32.mrf.mxu0
        %299 = vmatprep.mubr.f32.mxu0 0.0
        %300 = vmatmul.mubr.f32.gmra.mxu0 %v206
        %v301 = vpop.f32.mrf.mxu0
        %v302 = vadd.f32 %v193, %v301
        %v303 = vpop.f32.mrf.mxu0
        %304 = vmatprep.mubr.f32.mxu0 0.0
        %305 = vmatmul.mubr.f32.gmra.mxu0 %v209
        %v306 = vpop.f32.mrf.mxu0
        %v307 = vadd.f32 %v193, %v306
        %v308 = vpop.f32.mrf.mxu0
        %309 = vmatprep.mubr.f32.mxu0 0.0
        %310 = vmatmul.mubr.f32.gmra.mxu0 %v212
        %v311 = vpop.f32.mrf.mxu0
        %v312 = vadd.f32 %v193, %v311
        %v313 = vpop.f32.mrf.mxu0
        %314 = vmatprep.mubr.f32.mxu0 0.0
        %315 = vmatmul.mubr.f32.gmra.mxu0 %v215
        %v316 = vpop.f32.mrf.mxu0
        %v317 = vadd.f32 %v193, %v316
        %v318 = vpop.f32.mrf.mxu0
        %319 = vmatprep.mubr.f32.mxu0 0.0
        %320 = vmatmul.mubr.f32.gmra.mxu0 %v218
        %v321 = vpop.f32.mrf.mxu0
        %v322 = vadd.f32 %v193, %v321
        %v323 = vpop.f32.mrf.mxu0
        %324 = vdwg.mxu0
        %325 = vst [vmem:[%s164] sm:$0xff] %v287
        %326 = vst [vmem:[%s164 + $0x8] sm:$0xff] %v292
        %327 = vst [vmem:[%s164 + $0x10] sm:$0xff] %v297
        %328 = vst [vmem:[%s164 + $0x18] sm:$0xff] %v302
        %329 = vst [vmem:[%s164 + $0x20] sm:$0xff] %v307
        %330 = vst [vmem:[%s164 + $0x28] sm:$0xff] %v312
        %331 = vst [vmem:[%s164 + $0x30] sm:$0xff] %v317
        %332 = vst [vmem:[%s164 + $0x38] sm:$0xff] %v322
        %s333 = sand.u32 %s93, 1
        %s334 = scalar_lea.sflag [#allocation3], %s333
        %s335 = sand.u32 %s93, 1
        %s336 = smul.addr %s335, 64
        %s337 = scalar_lea.vmem [#allocation2], %s336
        // Predicated region
        $region33: #{tpu_custom_call.1} parent=31 // pred_check
          %p338 = pneg %p103
        $region34: #{tpu_custom_call.1} parent=31 // pred_check_branch
          %340 = sbr.rel (%p338) target = $region36
        $region35: #{tpu_custom_call.1} parent=31 // pred_region
          %s341 = smul.u32 8, %s17
          %s343 = ssub.s32 1024, 1024
          %344 = vsyncadd %s334, %s343
          %s345 = smul.addr %s341, 128
          %s346 = scalar_lea.hbm %s3, %s345
          %s347 = sshll.u32 %s337, 4
          %s348 = int_to_ptr.vmem [resolvable:$true] %s347
          %353 = dma.vmem_to_hbm [thread:$0]  %s348, 1024, %s346, %s334, 128, 128, 8
        $region36: #{tpu_custom_call.1} parent=31 // pred_fallthru
          _
      $region32: #{tpu_custom_call.1} parent=5 // pred_fallthru
        _
      %p354 = scmp.le.s32.totalorder 2, %s12
      // Predicated region
      $region37: #{tpu_custom_call.1} parent=5 // pred_check
        %p355 = pneg %p354
      $region38: #{tpu_custom_call.1} parent=5 // pred_check_branch
        %357 = sbr.rel (%p355) target = $region40
      $region39: #{tpu_custom_call.1} parent=5 // pred_region
        %s358 = ssub.s32 %s12, 2
        // Predicated region
        $region41: #{tpu_custom_call.1} parent=39 // pred_check
          %p359 = pneg %p109
        $region42: #{tpu_custom_call.1} parent=39 // pred_check_branch
          %361 = sbr.rel (%p359) target = $region44
        $region43: #{tpu_custom_call.1} parent=39 // pred_region
          %s362 = sand.u32 %s94, 1
          %s363 = scalar_lea.sflag [#allocation3], %s362
          %s364 = sand.u32 %s94, 1
          %s365 = smul.addr %s364, 64
          %s366 = scalar_lea.vmem [#allocation2], %s365
          %367 = dma.done %s363, 1024
        $region44: #{tpu_custom_call.1} parent=39 // pred_fallthru
          _
      $region40: #{tpu_custom_call.1} parent=5 // pred_fallthru
        _
    $region6: #{tpu_custom_call.1} parent=1 // loop_footer
      %s16 = sadd.s32 1, %s12
    $region7: #{tpu_custom_call.1} parent=1 // loop_footer_branch
      %11 = sbr.rel target = $region3
    $region8: #{tpu_custom_call.1} parent=1 // loop_exit
      _
    %368 = vsyncpa [#allocation3], 1
    %s369 = scalar_lea.sflag [#allocation3], 1
    %370 = vsyncpa %s369, 1

</llo_original>
